<compile_context>
chip_gen: v5e
topology: v5e:2x2
jax: 0.10.0
libtpu: 0.0.40
codegen_flags: <defaults>
</compile_context>

<pallas_src>
import functools
import math

import jax
import jax.numpy as jnp
from jax import lax
from jax.experimental import pallas as pl
from jax.experimental.pallas import tpu as pltpu


def _round_up(v: int, m: int) -> int:
    return -(-v // m) * m


# ----------------------------------------------------------------------------
# Buffer / table construction (matches the PyTorch __init__, built once).
# ----------------------------------------------------------------------------

def make_positional_encoding_buffer(d_model: int, max_len: int = 1000) -> jnp.ndarray:
    """pe buffer, (max_len, 1, d_model) float32 — used only by the fallback path."""
    position = jnp.arange(max_len, dtype=jnp.float32)[:, None]                   # (max_len, 1)
    div_term = jnp.exp(
        jnp.arange(0, d_model, 2, dtype=jnp.float32) * (-math.log(10000.0) / d_model)
    )                                                                            # (ceil(d/2),)
    ang = position * div_term                                                    # (max_len, ceil(d/2))
    pe = jnp.zeros((max_len, d_model), dtype=jnp.float32)
    pe = pe.at[:, 0::2].set(jnp.sin(ang))
    pe = pe.at[:, 1::2].set(jnp.cos(ang[:, : d_model // 2]))   # odd-d_model guard (see NOTE)
    return pe[:, None, :]                                      # (max_len, 1, d_model)


def make_freq_phase_table(d_model: int) -> jnp.ndarray:
    """(2, d_model) float32 table: row 0 = freq[d] = div_term[d//2], row 1 = phase.

    pe[pos, d] == sin(pos * freq[d] + phase[d])   (cos(a) == sin(a + pi/2)).
    """
    d = jnp.arange(d_model, dtype=jnp.float32)
    even_part = jnp.floor(d / 2.0) * 2.0                       # 2 * (d // 2) as f32
    freq = jnp.exp(even_part * (-math.log(10000.0) / d_model))
    phase = jnp.where((jnp.arange(d_model) % 2) == 0, 0.0, math.pi / 2.0).astype(jnp.float32)
    return jnp.stack([freq, phase], axis=0)                    # (2, d_model)


# ----------------------------------------------------------------------------
# Fast path: flattened (rows, D) layout, pe generated in-kernel (no pe input).
# ----------------------------------------------------------------------------

def _pe_fused_kernel(tab_ref, x_ref, o_ref, *, batch: int, block_rows: int):
    # tab_ref: (2, D) f32 resident table (row 0 = freq, row 1 = phase)
    # x_ref / o_ref: (block_rows, D) dense row tiles of the flattened input.
    base = pl.program_id(0) * block_rows
    r_i = lax.broadcasted_iota(jnp.int32, (block_rows, 1), 0) + base             # absolute row id
    # pos = row // batch, done in f32. +0.5 keeps floor() exact for all rows
    # up to well past max_len*batch (margin 0.5/batch >> f32 rounding error).
    pos = jnp.floor((r_i.astype(jnp.float32) + 0.5) / batch)                     # (block_rows, 1)
    freq = tab_ref[0:1, :]                                                        # (1, D)
    phase = tab_ref[1:2, :]                                                       # (1, D)
    pe = jnp.sin(pos * freq + phase)                                              # (block_rows, D) f32
    o_ref[...] = (x_ref[...] + pe).astype(o_ref.dtype)


def _choose_row_block(rows: int, d: int, itemsize: int, target_bytes: int) -> int:
    """Rows per block: multiple of 8 (or the full extent), ~target_bytes of padded
    VMEM per x block, and >= 2 grid steps whenever rows allow it (v7x megacore)."""
    lane_bytes = _round_up(d, 128) * itemsize
    tr = max(8, (target_bytes // (lane_bytes * 8)) * 8)
    tr = min(tr, _round_up(rows, 8))
    if rows > 8 and tr >= rows:          # force >= 2 blocks for megacore / pipelining
        tr = _round_up(pl.cdiv(rows, 2), 8)
    if tr >= rows:
        tr = rows                        # tiny input: single full-extent block
    return tr


def _fused_forward(x, table, *, target_block_bytes):
    S, B, D = x.shape
    rows = S * B
    x2 = x.reshape(rows, D)              # free row-major reshape, no transpose
    itemsize = jnp.dtype(x.dtype).itemsize
    tr = _choose_row_block(rows, D, itemsize, target_block_bytes)
    # (For d_model < 128 one could additionally fold batch into lanes when
    #  B*D % 128 == 0 to avoid masked partial stores; not done here.)
    kernel = functools.partial(_pe_fused_kernel, batch=B, block_rows=tr)
    out2 = pl.pallas_call(
        kernel,
        out_shape=jax.ShapeDtypeStruct((rows, D), x.dtype),
        grid=(pl.cdiv(rows, tr),),
        in_specs=[
            pl.BlockSpec((2, D), lambda i: (0, 0)),      # tiny resident freq/phase table
            pl.BlockSpec((tr, D), lambda i: (i, 0)),     # dense x row tile
        ],
        out_specs=pl.BlockSpec((tr, D), lambda i: (i, 0)),
        compiler_params=pltpu.CompilerParams(
            dimension_semantics=("parallel",),
            vmem_limit_bytes=48 * 1024 * 1024,
        ),
    )(table, x2)
    return out2.reshape(S, B, D)


# ----------------------------------------------------------------------------
# Fallback path: previously-validated 3-D streamed-pe kernel (guaranteed to
# lower); used only if the fused kernel fails to compile on this Mosaic build.
# ----------------------------------------------------------------------------

def _pe_add_kernel(x_ref, pe_ref, o_ref):
    # x_ref: (tS, B, D), pe_ref: (tS, 1, D) broadcast over batch.
    o_ref[...] = (x_ref[...] + pe_ref[...]).astype(o_ref.dtype)


def _choose_seq_block(s: int, b: int, d: int, itemsize: int, target_bytes: int) -> int:
    slab = _round_up(b, 8) * _round_up(d, 128) * itemsize
    ts = max(1, min(s, target_bytes // slab))
    if s > 1 and ts >= s:                # prefer >= 2 grid steps
        ts = pl.cdiv(s, 2)
    return max(1, min(ts, s))


def _streamed_forward(x, pe_buffer, *, target_block_bytes):
    S, B, D = x.shape
    itemsize = jnp.dtype(x.dtype).itemsize
    ts = _choose_seq_block(S, B, D, itemsize, target_block_bytes)
    return pl.pallas_call(
        _pe_add_kernel,
        out_shape=jax.ShapeDtypeStruct((S, B, D), x.dtype),
        grid=(pl.cdiv(S, ts),),
        in_specs=[
            pl.BlockSpec((ts, B, D), lambda i: (i, 0, 0)),
            # Full (max_len, 1, D) buffer passed; index_map touches only rows < S.
            pl.BlockSpec((ts, 1, D), lambda i: (i, 0, 0)),
        ],
        out_specs=pl.BlockSpec((ts, B, D), lambda i: (i, 0, 0)),
        compiler_params=pltpu.CompilerParams(
            dimension_semantics=("parallel",),
            vmem_limit_bytes=48 * 1024 * 1024,
        ),
    )(x, pe_buffer)


# ----------------------------------------------------------------------------
# Dispatcher + module-like wrapper.
# ----------------------------------------------------------------------------

_FUSED_STATUS = {"ok": None}  # None = unknown, True / False after first attempt


def positional_encoding_forward(x, pe_buffer, table, *, max_len,
                                target_block_bytes=4 * 1024 * 1024):
    if x.ndim != 3:
        raise ValueError(f"expected x of shape (seq, batch, d_model), got {x.shape}")
    if x.shape[0] > max_len:
        raise ValueError(f"seq_len {x.shape[0]} exceeds max_len {max_len}")

    if _FUSED_STATUS["ok"] is not False:
        try:
            out = _fused_forward(x, table, target_block_bytes=target_block_bytes)
            out = jax.block_until_ready(out)
            _FUSED_STATUS["ok"] = True
            return out
        except Exception:
            if _FUSED_STATUS["ok"]:
                raise                       # fused path known-good -> real error
            _FUSED_STATUS["ok"] = False     # lowering not available -> fall back
    return _streamed_forward(x, pe_buffer, target_block_bytes=target_block_bytes)


class PositionalEncoding:
    """Mirrors the PyTorch module: __init__(d_model, max_len), __call__(x)."""

    def __init__(self, d_model: int, max_len: int = 1000):
        self.d_model = d_model
        self.max_len = max_len
        self.pe = make_positional_encoding_buffer(d_model, max_len)   # (max_len, 1, D)
        self.table = make_freq_phase_table(d_model)                    # (2, D)

    def __call__(self, x, *, target_block_bytes=4 * 1024 * 1024):
        return positional_encoding_forward(
            x, self.pe, self.table, max_len=self.max_len,
            target_block_bytes=target_block_bytes)


if __name__ == "__main__":
    # Small shapes implied by the forward: x is (seq, batch, d_model).
    seq_len, batch, d_model = 8, 2, 32
    max_len = 1000

    module = PositionalEncoding(d_model, max_len)

    x = jax.random.normal(jax.random.PRNGKey(0), (seq_len, batch, d_model), jnp.float32)
    out = jax.block_until_ready(module(x))
    ref = x + module.pe[:seq_len]
    assert out.shape == (seq_len, batch, d_model)
    assert jnp.allclose(out, ref, atol=1e-5, rtol=1e-5), "mismatch vs reference"

    # Exercise the multi-block pipelined path with a partial last tile.
    seq2 = 21
    x2 = jax.random.normal(jax.random.PRNGKey(1), (seq2, batch, d_model), jnp.float32)
    out2 = jax.block_until_ready(module(x2, target_block_bytes=4096))
    ref2 = x2 + module.pe[:seq2]
    assert jnp.allclose(out2, ref2, atol=1e-5, rtol=1e-5), "mismatch vs reference (tiled path)"

    print("KERNEL_OK")
</pallas_src>

<mosaic_0001>
module attributes {stable_mosaic.version = 11 : i64} {
  func.func @_pe_fused_kernel(%arg0: i32, %arg1: memref<2x32xf32, #tpu.memory_space<vmem>>, %arg2: memref<8x32xf32, #tpu.memory_space<vmem>>, %arg3: memref<8x32xf32, #tpu.memory_space<vmem>>) attributes {dimension_semantics = [#tpu.dimension_semantics<parallel>], iteration_bounds = array<i64: 2>, scalar_prefetch = 0 : i64, scratch_operands = 0 : i64, tpu.core_type = #tpu.core_type<tc>, window_params = [{pipeline_mode = #tpu.pipeline_mode<synchronous>, transform_indices = @transform_0, window_bounds = array<i64: 2, 32>}, {transform_indices = @transform_1, window_bounds = array<i64: 8, 32>}, {transform_indices = @transform_2, window_bounds = array<i64: 8, 32>}]} {
    %c8_i32 = arith.constant 8 : i32
    %0 = arith.muli %arg0, %c8_i32 : i32
    %1 = tpu.iota {dimensions = array<i32: 0>} : vector<8x1xi32>
    %2 = vector.broadcast %0 : i32 to vector<8x1xi32>
    %3 = arith.addi %1, %2 : vector<8x1xi32>
    %4 = arith.sitofp %3 : vector<8x1xi32> to vector<8x1xf32>
    %cst = arith.constant 5.000000e-01 : f32
    %5 = vector.broadcast %cst : f32 to vector<8x1xf32>
    %6 = arith.addf %4, %5 : vector<8x1xf32>
    %cst_0 = arith.constant 2.000000e+00 : f32
    %7 = vector.broadcast %cst_0 : f32 to vector<8x1xf32>
    %8 = arith.divf %6, %7 : vector<8x1xf32>
    %9 = math.floor %8 : vector<8x1xf32>
    %c0 = arith.constant 0 : index
    %c0_1 = arith.constant 0 : index
    %10 = vector.load %arg1[%c0, %c0_1] : memref<2x32xf32, #tpu.memory_space<vmem>>, vector<1x32xf32>
    %c1 = arith.constant 1 : index
    %c0_2 = arith.constant 0 : index
    %11 = vector.load %arg1[%c1, %c0_2] : memref<2x32xf32, #tpu.memory_space<vmem>>, vector<1x32xf32>
    %12 = vector.broadcast %9 : vector<8x1xf32> to vector<8x32xf32>
    %13 = vector.broadcast %10 : vector<1x32xf32> to vector<8x32xf32>
    %14 = arith.mulf %12, %13 : vector<8x32xf32>
    %15 = vector.broadcast %11 : vector<1x32xf32> to vector<8x32xf32>
    %16 = arith.addf %14, %15 : vector<8x32xf32>
    %17 = math.sin %16 : vector<8x32xf32>
    %c0_3 = arith.constant 0 : index
    %c0_4 = arith.constant 0 : index
    %18 = vector.load %arg2[%c0_3, %c0_4] : memref<8x32xf32, #tpu.memory_space<vmem>>, vector<8x32xf32>
    %19 = arith.addf %18, %17 : vector<8x32xf32>
    %c0_5 = arith.constant 0 : index
    %c0_6 = arith.constant 0 : index
    %20 = vector.load %arg3[%c0_5, %c0_6] : memref<8x32xf32, #tpu.memory_space<vmem>>, vector<8x32xf32>
    tpu.vector_store %arg3[%c0_5, %c0_6], %19 {strides = array<i32>} : memref<8x32xf32, #tpu.memory_space<vmem>>, vector<8x32xf32>,
    return
  }
  func.func @transform_0(%arg0: i32) -> (i32, i32) {
    %c0_i32 = arith.constant 0 : i32
    %c0_i32_0 = arith.constant 0 : i32
    %c0_i32_1 = arith.constant 0 : i32
    return %c0_i32, %c0_i32_0 : i32, i32
  }
  func.func @transform_1(%arg0: i32) -> (i32, i32) {
    %c0_i32 = arith.constant 0 : i32
    %c0_i32_0 = arith.constant 0 : i32
    return %arg0, %c0_i32 : i32, i32
  }
  func.func @transform_2(%arg0: i32) -> (i32, i32) {
    %c0_i32 = arith.constant 0 : i32
    %c0_i32_0 = arith.constant 0 : i32
    return %arg0, %c0_i32 : i32, i32
  }
}

module attributes {stable_mosaic.version = 11 : i64} {
  func.func @_pe_add_kernel(%arg0: i32, %arg1: memref<4x2x32xf32, #tpu.memory_space<vmem>>, %arg2: memref<4x1x32xf32, #tpu.memory_space<vmem>>, %arg3: memref<4x2x32xf32, #tpu.memory_space<vmem>>) attributes {dimension_semantics = [#tpu.dimension_semantics<parallel>], iteration_bounds = array<i64: 2>, scalar_prefetch = 0 : i64, scratch_operands = 0 : i64, tpu.core_type = #tpu.core_type<tc>, window_params = [{transform_indices = @transform_0, window_bounds = array<i64: 4, 2, 32>}, {transform_indices = @transform_1, window_bounds = array<i64: 4, 1, 32>}, {transform_indices = @transform_2, window_bounds = array<i64: 4, 2, 32>}]} {
    %c0 = arith.constant 0 : index
    %c0_0 = arith.constant 0 : index
    %c0_1 = arith.constant 0 : index
    %0 = vector.load %arg1[%c0, %c0_0, %c0_1] : memref<4x2x32xf32, #tpu.memory_space<vmem>>, vector<4x2x32xf32>
    %c0_2 = arith.constant 0 : index
    %c0_3 = arith.constant 0 : index
    %c0_4 = arith.constant 0 : index
    %1 = vector.load %arg2[%c0_2, %c0_3, %c0_4] : memref<4x1x32xf32, #tpu.memory_space<vmem>>, vector<4x1x32xf32>
    %2 = vector.broadcast %1 : vector<4x1x32xf32> to vector<4x2x32xf32>
    %3 = arith.addf %0, %2 : vector<4x2x32xf32>
    %c0_5 = arith.constant 0 : index
    %c0_6 = arith.constant 0 : index
    %c0_7 = arith.constant 0 : index
    %4 = vector.load %arg3[%c0_5, %c0_6, %c0_7] : memref<4x2x32xf32, #tpu.memory_space<vmem>>, vector<4x2x32xf32>
    tpu.vector_store %arg3[%c0_5, %c0_6, %c0_7], %3 {strides = array<i32>} : memref<4x2x32xf32, #tpu.memory_space<vmem>>, vector<4x2x32xf32>,
    return
  }
  func.func @transform_0(%arg0: i32) -> (i32, i32, i32) {
    %c0_i32 = arith.constant 0 : i32
    %c0_i32_0 = arith.constant 0 : i32
    %c0_i32_1 = arith.constant 0 : i32
    return %arg0, %c0_i32, %c0_i32_0 : i32, i32, i32
  }
  func.func @transform_1(%arg0: i32) -> (i32, i32, i32) {
    %c0_i32 = arith.constant 0 : i32
    %c0_i32_0 = arith.constant 0 : i32
    %c0_i32_1 = arith.constant 0 : i32
    return %arg0, %c0_i32, %c0_i32_0 : i32, i32, i32
  }
  func.func @transform_2(%arg0: i32) -> (i32, i32, i32) {
    %c0_i32 = arith.constant 0 : i32
    %c0_i32_0 = arith.constant 0 : i32
    %c0_i32_1 = arith.constant 0 : i32
    return %arg0, %c0_i32, %c0_i32_0 : i32, i32, i32
  }
}

</mosaic_0001>

<llo_original>
// kernel: tpu_custom_call.1
$region0: #{tpu_custom_call.1}
  #allocation0 [shape = 'u32[]', space=smem, size = 0x4, offset = 0x4, fixed_abs, tag = 'smem constant byte address 0x4 - core index']
  #allocation1 [shape = 'u32[72,128]{1,0:T(1,128)}', space=vmem, size = 0x9000, scoped, tag = 'internal scratch']
  %s0 = inlined_call_operand.hbm [shape: f32[2,32], index: 0, kind: input, shape index: {}]
  %s1 = inlined_call_operand.hbm [shape: f32[16,32], index: 1, kind: input, shape index: {}]
  %s2 = inlined_call_operand.hbm [shape: f32[16,32], index: 2, kind: output, shape index: {}]
  %s3 = sld [smem:[#allocation0]]
  $region49: #{tpu_custom_call.1} parent=0
    _
  %s5 = ssub.s32 1, %s3
  %s6 = scalar_select 0, %s5, %s3
  $region1: #{tpu_custom_call.1} parent=0
    #allocation2 [shape = 'u8[1024]{0}', space=vmem, size = 0x400, scoped, tag = 'input window, operand 0, single buffered']
    #allocation3 [shape = 's32[2]{0}', space=sflag, size = 0x8, scoped, tag = 'scoped memory for tpu_custom_call.1']
    #allocation4 [shape = 's32[2]{0}', space=sflag, size = 0x8, scoped, tag = 'scoped memory for tpu_custom_call.1']
    #allocation5 [shape = 'u8[8192]{0}', space=vmem, size = 0x2000, scoped, tag = 'input window, operand 1']
    #allocation6 [shape = 's32[2]{0}', space=sflag, size = 0x8, scoped, tag = 'scoped memory for tpu_custom_call.1']
    #allocation7 [shape = 'u8[8192]{0}', space=vmem, size = 0x2000, scoped, tag = 'output window, operand 0']
    %7 = vsyncpa [#allocation3], 0
    %8 = vsyncpa [#allocation6], 0
    %s9 = scalar_lea.sflag [#allocation6], 1
    %10 = vsyncpa %s9, 0
    %11 = vsyncpa [#allocation4], 0
    %s12 = scalar_lea.sflag [#allocation4], 1
    %13 = vsyncpa %s12, 0
    loop: start=0, step=1, limit=4
    $region2: #{tpu_custom_call.1} parent=1 // loop_pre_header
      _
    $region3: #{tpu_custom_call.1} parent=1 // loop_header
      %s15 = sphi 0, %s19
      %p16 = scmp.ge.s32.totalorder %s15, 4
      %s23 = sphi 0, %s23
      %s25 = sphi 0, %s23
      %s26 = sphi 0, %s25
      %s40 = sphi 0, %s26
      %s46 = sphi 0, %s48
      %s49 = sphi 0, %s46
      %s50 = sphi 0, %s49
      %s66 = sphi 0, %s50
      %s72 = sphi 0, %s74
      %s75 = sphi 0, %s72
      %s76 = sphi 0, %s75
      %s92 = sphi 0, %s76
    $region4: #{tpu_custom_call.1} parent=1 // loop_header_branch
      %18 = sbr.rel (%p16) target = $region8
    $region5: #{tpu_custom_call.1} parent=1 // loop_body
      %s20 = ssub.s32 %s15, 1
      %s21 = ssub.s32 %s15, 2
      %s22 = sadd.s32 %s15, 1
      %s24 = sadd.s32 %s23, 1
      %p27 = scmp.eq.s32.totalorder %s15, 1
      %p28 = scmp.ne.s32.totalorder %s23, %s25
      %p29 = scmp.eq.s32.totalorder %s15, 0
      %p30 = por %p28, %p29
      %p31 = scmp.ne.s32.totalorder %s23, %s25
      %p32 = scmp.eq.s32.totalorder %s20, 1
      %p33 = por %p31, %p32
      %p34 = scmp.ne.s32.totalorder %s25, %s26
      %p35 = scmp.eq.s32.totalorder %s20, 0
      %p36 = por %p34, %p35
      %p37 = scmp.ne.s32.totalorder %s25, %s26
      %p38 = scmp.eq.s32.totalorder %s21, 1
      %p39 = por %p37, %p38
      %p41 = scmp.ne.s32.totalorder %s26, %s40
      %p42 = scmp.eq.s32.totalorder %s21, 0
      %p43 = por %p41, %p42
      %s44 = ssub.s32 %s15, %s22
      %p45 = scmp.eq.s32.totalorder %s44, 0
      %s47 = sadd.s32 %s46, 1
      %s48 = scalar_select %p45, %s46, %s47
      %p51 = pneg %p45
      %p52 = scmp.eq.s32.totalorder %s15, 1
      %p53 = por %p51, %p52
      %p54 = scmp.ne.s32.totalorder %s46, %s49
      %p55 = scmp.eq.s32.totalorder %s15, 0
      %p56 = por %p54, %p55
      %p57 = scmp.ne.s32.totalorder %s46, %s49
      %p58 = scmp.eq.s32.totalorder %s20, 1
      %p59 = por %p57, %p58
      %p60 = scmp.ne.s32.totalorder %s49, %s50
      %p61 = scmp.eq.s32.totalorder %s20, 0
      %p62 = por %p60, %p61
      %p63 = scmp.ne.s32.totalorder %s49, %s50
      %p64 = scmp.eq.s32.totalorder %s21, 1
      %p65 = por %p63, %p64
      %p67 = scmp.ne.s32.totalorder %s50, %s66
      %p68 = scmp.eq.s32.totalorder %s21, 0
      %p69 = por %p67, %p68
      %s70 = ssub.s32 %s15, %s22
      %p71 = scmp.eq.s32.totalorder %s70, 0
      %s73 = sadd.s32 %s72, 1
      %s74 = scalar_select %p71, %s72, %s73
      %p77 = pneg %p71
      %p78 = scmp.eq.s32.totalorder %s15, 1
      %p79 = por %p77, %p78
      %p80 = scmp.ne.s32.totalorder %s72, %s75
      %p81 = scmp.eq.s32.totalorder %s15, 0
      %p82 = por %p80, %p81
      %p83 = scmp.ne.s32.totalorder %s72, %s75
      %p84 = scmp.eq.s32.totalorder %s20, 1
      %p85 = por %p83, %p84
      %p86 = scmp.ne.s32.totalorder %s75, %s76
      %p87 = scmp.eq.s32.totalorder %s20, 0
      %p88 = por %p86, %p87
      %p89 = scmp.ne.s32.totalorder %s75, %s76
      %p90 = scmp.eq.s32.totalorder %s21, 1
      %p91 = por %p89, %p90
      %p93 = scmp.ne.s32.totalorder %s76, %s92
      %p94 = scmp.eq.s32.totalorder %s21, 0
      %p95 = por %p93, %p94
      %p96 = scmp.le.s32.totalorder 1, %s15
      %p97 = scmp.lt.s32.totalorder %s15, 3
      %p98 = pnand %p96, %p97
      %p99 = pneg %p98
      // Predicated region
      $region9: #{tpu_custom_call.1} parent=5 // pred_check
        _
      $region10: #{tpu_custom_call.1} parent=5 // pred_check_branch
        %101 = sbr.rel (%p98) target = $region12
      $region11: #{tpu_custom_call.1} parent=5 // pred_region
        %s102 = ssub.s32 %s15, 1
        // Predicated region
        $region13: #{tpu_custom_call.1} parent=11 // pred_check
          %p103 = pneg %p36
        $region14: #{tpu_custom_call.1} parent=11 // pred_check_branch
          %105 = sbr.rel (%p103) target = $region16
        $region15: #{tpu_custom_call.1} parent=11 // pred_region
          %107 = vsyncadd [#allocation3], 0
          %s109 = sshll.u32 %s0, 4
          %s110 = int_to_ptr.hbm [resolvable:$true] %s109
          %s111 = sshll.u32 [#allocation2], 4
          %s112 = int_to_ptr.vmem [resolvable:$true] %s111
          %114 = dma.hbm_to_vmem [thread:$0]  %s110, 32, %s112, [#allocation3]
        $region16: #{tpu_custom_call.1} parent=11 // pred_fallthru
          _
      $region12: #{tpu_custom_call.1} parent=5 // pred_fallthru
        _
      %p115 = scmp.lt.s32.totalorder %s15, 2
      // Predicated region
      $region17: #{tpu_custom_call.1} parent=5 // pred_check
        %p116 = pneg %p115
      $region18: #{tpu_custom_call.1} parent=5 // pred_check_branch
        %118 = sbr.rel (%p116) target = $region20
      $region19: #{tpu_custom_call.1} parent=5 // pred_region
        // Predicated region
        $region21: #{tpu_custom_call.1} parent=19 // pred_check
          %p119 = pneg %p56
        $region22: #{tpu_custom_call.1} parent=19 // pred_check_branch
          %121 = sbr.rel (%p119) target = $region24
        $region23: #{tpu_custom_call.1} parent=19 // pred_region
          %s122 = sand.u32 %s46, 1
          %s123 = scalar_lea.sflag [#allocation6], %s122
          %s124 = sand.u32 %s46, 1
          %s125 = smul.addr %s124, 8
          %s126 = scalar_lea.vmem [#allocation5], %s125
          %128 = vsyncadd %s123, 0
          %s129 = smul.addr %s15, 8
          %s130 = scalar_lea.hbm %s1, %s129
          %s132 = sshll.u32 %s130, 4
          %s133 = int_to_ptr.hbm [resolvable:$true] %s132
          %s134 = sshll.u32 %s126, 4
          %s135 = int_to_ptr.vmem [resolvable:$true] %s134
          %137 = dma.hbm_to_vmem [thread:$0]  %s133, 128, %s135, %s123
        $region24: #{tpu_custom_call.1} parent=19 // pred_fallthru
          _
      $region20: #{tpu_custom_call.1} parent=5 // pred_fallthru
        _
      %p138 = scmp.le.s32.totalorder 1, %s15
      %p139 = scmp.lt.s32.totalorder %s15, 3
      %p140 = pnand %p138, %p139
      %p141 = pneg %p140
      // Predicated region
      $region25: #{tpu_custom_call.1} parent=5 // pred_check
        _
      $region26: #{tpu_custom_call.1} parent=5 // pred_check_branch
        %143 = sbr.rel (%p140) target = $region28
      $region27: #{tpu_custom_call.1} parent=5 // pred_region
        %s144 = ssub.s32 %s15, 1
        // Predicated region
        $region29: #{tpu_custom_call.1} parent=27 // pred_check
          %p145 = pneg %p36
        $region30: #{tpu_custom_call.1} parent=27 // pred_check_branch
          %147 = sbr.rel (%p145) target = $region32
        $region31: #{tpu_custom_call.1} parent=27 // pred_region
          %149 = dma.done [#allocation3], 32
        $region32: #{tpu_custom_call.1} parent=27 // pred_fallthru
          _
        %s150 = sand.u32 %s49, 1
        %s151 = scalar_lea.sflag [#allocation6], %s150
        %s152 = sand.u32 %s49, 1
        %s153 = smul.addr %s152, 8
        %s154 = scalar_lea.vmem [#allocation5], %s153
        // Predicated region
        $region33: #{tpu_custom_call.1} parent=27 // pred_check
          %p155 = pneg %p62
        $region34: #{tpu_custom_call.1} parent=27 // pred_check_branch
          %157 = sbr.rel (%p155) target = $region36
        $region35: #{tpu_custom_call.1} parent=27 // pred_region
          %159 = dma.done %s151, 128
        $region36: #{tpu_custom_call.1} parent=27 // pred_fallthru
          _
        %p160 = pneg %p36
        %p161 = pneg %p33
        %s162 = sand.u32 %s49, 1
        %s163 = scalar_lea.sflag [#allocation6], %s162
        %s164 = sand.u32 %s49, 1
        %s165 = smul.addr %s164, 8
        %s166 = scalar_lea.vmem [#allocation5], %s165
        %p167 = pneg %p62
        %p168 = pneg %p59
        %p169 = pneg %p88
        %p170 = pneg %p85
        %s171 = sand.u32 %s75, 1
        %s172 = scalar_lea.sflag [#allocation4], %s171
        %s173 = sand.u32 %s75, 1
        %s174 = smul.addr %s173, 8
        %s175 = scalar_lea.vmem [#allocation7], %s174
        %s176 = smul.u32 %s20, 8
        %v177 = vlaneseq
        %v178 = vshrl.u32 %v177, 7
        %v179 = vstv %s176
        %v180 = vadd.s32 %v178, %v179
        %v181 = vcvt.s32.f32 %v180
        %v182 = vadd.f32 %v181, 0.5
        %v183 = vrcp.pop 2.0
        %v184 = vmul.f32 2.0, %v183
        %v185 = vsub.f32 1.0, %v184
        %v186 = vmul.f32 %v183, %v185
        %v187 = vadd.f32 %v183, %v186
        %vm188 = vweird.f32 %v183
        %v189 = vsel %vm188, %v183, %v187
        %v190 = vmul.f32 %v182, %v189
        %v191 = vfloor.f32 %v190
        %v192 = vld [vmem:[#allocation2] sm:$0x1]
        %v193 = vld [vmem:[#allocation2 + $0x1] sm:$0x1]
        %v194 = vperm.slane %v192, 0
        %v195 = vmul.f32 %v191, %v194
        %v196 = vperm.slane %v193, 0
        %v197 = vadd.f32 %v195, %v196
        %v198 = vand.u32 2147483647, %v197
        %vm199 = vcmp.le.f32.partialorder %v198, 0.7853982
        %vm200 = vcmp.lt.s32.totalorder %v197, 0
        %v201 = vand.u32 %v197, 2139095040
        %v202 = vshrl.u32 %v201, 23
        %v203 = vsub.s32 %v202, 127
        %v204 = vand.u32 2147483647, %v197
        %v205 = vand.u32 %v204, 8388607
        %v206 = vor.u32 %v205, 8388608
        %v207 = vsub.s32 0, %v206
        %v208 = vadd.s32 %v203, 1
        %vm209 = vcmp.gt.s32.totalorder %v208, 0
        %v210 = vsel %vm209, %v208, 0
        %v211 = vshrl.u32 %v210, 5
        %v212 = vand.u32 %v210, 31
        %v213 = vsub.s32 32, %v212
        %v214 = vshrl.u32 683565275, %v213
        %v215 = vshll.u32 683565275, %v212
        %v216 = vshrl.u32 2475754826, %v213
        %v217 = vor.u32 %v215, %v216
        %v218 = vshll.u32 2475754826, %v212
        %v219 = vshrl.u32 2131351028, %v213
        %v220 = vor.u32 %v218, %v219
        %v221 = vshll.u32 2131351028, %v212
        %v222 = vshrl.u32 2102212464, %v213
        %v223 = vor.u32 %v221, %v222
        %v224 = vshll.u32 2102212464, %v212
        %v225 = vshrl.u32 920167782, %v213
        %v226 = vor.u32 %v224, %v225
        %v227 = vshll.u32 920167782, %v212
        %v228 = vshrl.u32 1326507024, %v213
        %v229 = vor.u32 %v227, %v228
        %vm230 = vcmp.lt.s32.totalorder %v211, 1
        %vm231 = vcmp.lt.s32.totalorder %v211, 2
        %vm232 = vcmp.lt.s32.totalorder %v211, 3
        %vm233 = vcmp.lt.s32.totalorder %v211, 4
        %v234 = vsel %vm230, %v214, %v217
        %v235 = vsel %vm233, %v223, 2102212464
        %v236 = vsel %vm232, %v220, %v235
        %v237 = vsel %vm231, %v234, %v236
        %v238 = vsel %vm230, %v217, %v220
        %v239 = vsel %vm233, %v226, 920167782
        %v240 = vsel %vm232, %v223, %v239
        %v241 = vsel %vm231, %v238, %v240
        %v242 = vsel %vm230, %v220, %v223
        %v243 = vsel %vm233, %v229, 1326507024
        %v244 = vsel %vm232, %v226, %v243
        %v245 = vsel %vm231, %v242, %v244
        %v246 = vshll.u32 %v206, 8
        %v247 = vand.u32 %v246, 65535
        %v248 = vshrl.u32 %v246, 16
        %v249 = vand.u32 %v245, 65535
        %v250 = vshrl.u32 %v245, 16
        %v251 = vmul.u32 %v247, %v249
        %v252 = vmul.u32 %v247, %v250
        %v253 = vmul.u32 %v248, %v249
        %v254 = vmul.u32 %v248, %v250
        %v255 = vshll.u32 %v252, 16
        %v256 = vshrl.u32 %v252, 16
        %v257 = vshll.u32 %v253, 16
        %v258 = vshrl.u32 %v253, 16
        %vm259 = vc.u32 %v251, %v255
        %v260 = vsel %vm259, 1, 0
        %v261 = vadd.s32 %v251, %v255
        %v262 = vadd.s32 %v254, %v260
        %vm263 = vc.u32 %v261, %v257
        %v264 = vsel %vm263, 1, 0
        %v265 = vadd.s32 %v261, %v257
        %v266 = vadd.s32 %v262, %v264
        %v267 = vadd.s32 %v266, %v256
        %v268 = vadd.s32 %v267, %v258
        %v269 = vand.u32 %v246, 65535
        %v270 = vshrl.u32 %v246, 16
        %v271 = vand.u32 %v241, 65535
        %v272 = vshrl.u32 %v241, 16
        %v273 = vmul.u32 %v269, %v271
        %v274 = vmul.u32 %v269, %v272
        %v275 = vmul.u32 %v270, %v271
        %v276 = vmul.u32 %v270, %v272
        %v277 = vshll.u32 %v274, 16
        %v278 = vshrl.u32 %v274, 16
        %v279 = vshll.u32 %v275, 16
        %v280 = vshrl.u32 %v275, 16
        %vm281 = vc.u32 %v273, %v277
        %v282 = vsel %vm281, 1, 0
        %v283 = vadd.s32 %v273, %v277
        %v284 = vadd.s32 %v276, %v282
        %vm285 = vc.u32 %v283, %v279
        %v286 = vsel %vm285, 1, 0
        %v287 = vadd.s32 %v283, %v279
        %v288 = vadd.s32 %v284, %v286
        %v289 = vadd.s32 %v288, %v278
        %v290 = vadd.s32 %v289, %v280
        %v291 = vmul.u32 %v246, %v237
        %v292 = vadd.s32 %v268, %v287
        %vm293 = vc.u32 %v268, %v287
        %v294 = vadd.s32 %v290, 1
        %v295 = vsel %vm293, %v294, %v290
        %v296 = vadd.s32 %v291, %v295
        %v297 = vadd.s32 %v296, 536870912
        %v298 = vshrl.u32 %v297, 30
        %v299 = vshll.u32 %v298, 30
        %v300 = vsub.s32 %v296, %v299
        %vm301 = vcmp.lt.s32.totalorder %v300, 0
        %v302 = vsub.s32 0, %v300
        %v303 = vsel %vm301, %v302, %v300
        %v304 = vclz %v303
        %v305 = vsub.s32 %v304, 2
        %vm306 = vcmp.gt.s32.totalorder 0, %v305
        %v307 = vsel %vm306, 0, %v305
        %v308 = vsub.s32 32, %v307
        %v309 = vshll.u32 %v300, %v307
        %v310 = vshrl.u32 %v292, %v308
        %v311 = vor.u32 %v309, %v310
        %v312 = vsub.s32 4294967266, %v307
        %v313 = vadd.s32 %v312, 127
        %v314 = vshll.u32 %v313, 23
        %v315 = vor.u32 4788187, %v314
        %v316 = vand.u32 2147483647, %v315
        %v318 = vcvt.s32.f32 %v311
        %v319 = vmul.f32 %v318, %v316
        %v320 = vxor.u32 %v319, 2147483648
        %v321 = vsel %vm200, %v320, %v319
        %v322 = vsub.s32 4, %v298
        %v323 = vsel %vm200, %v322, %v298
        %v324 = vsel %vm199, %v197, %v321
        %v325 = vsel %vm199, 0, %v323
        %v326 = vmul.f32 %v324, %v324
        %v327 = vmul.f32 %v326, -0.001358992
        %v328 = vadd.f32 %v327, 0.041655596
        %v329 = vmul.f32 %v326, %v328
        %v330 = vadd.f32 %v329, -0.4999988
        %v331 = vmul.f32 %v326, %v330
        %v332 = vadd.f32 1.0, %v331
        %v333 = vmul.f32 %v324, %v324
        %v334 = vmul.f32 %v333, -0.00019511016
        %v335 = vadd.f32 %v334, 0.008332121
        %v336 = vmul.f32 %v333, %v335
        %v337 = vadd.f32 %v336, -0.16666654
        %v338 = vmul.f32 %v333, %v337
        %v339 = vadd.f32 %v338, 1.0
        %v340 = vmul.f32 %v339, %v324
        %vm341 = vweird.f32 %v197
        %v342 = vadd.s32 %v325, 3
        %v343 = vand.u32 %v342, 3
        %vm344 = vcmp.lt.s32.totalorder %v343, 2
        %vm345 = vcmp.eq.s32.totalorder %v343, 0
        %v346 = vxor.u32 %v340, 2147483648
        %v347 = vsel %vm345, %v332, %v346
        %vm348 = vcmp.eq.s32.totalorder %v343, 2
        %v349 = vxor.u32 %v332, 2147483648
        %v350 = vsel %vm348, %v349, %v340
        %v351 = vsel %vm344, %v347, %v350
        %v352 = vsel %vm341, nan, %v351
        %v353 = vld [vmem:[%s154] sm:$0xff]
        %v354 = vadd.f32 %v353, %v352
        %vm355 = vcmask 261120
        %356 = vst.msk [vmem:[%s175] sm:$0xff] %vm355, %v354
        %s357 = sand.u32 %s75, 1
        %s358 = scalar_lea.sflag [#allocation4], %s357
        %s359 = sand.u32 %s75, 1
        %s360 = smul.addr %s359, 8
        %s361 = scalar_lea.vmem [#allocation7], %s360
        // Predicated region
        $region37: #{tpu_custom_call.1} parent=27 // pred_check
          %p362 = pneg %p85
        $region38: #{tpu_custom_call.1} parent=27 // pred_check_branch
          %364 = sbr.rel (%p362) target = $region40
        $region39: #{tpu_custom_call.1} parent=27 // pred_region
          %366 = vsyncadd %s358, 0
          %s367 = smul.addr %s20, 8
          %s368 = scalar_lea.hbm %s2, %s367
          %s370 = sshll.u32 %s361, 4
          %s371 = int_to_ptr.vmem [resolvable:$true] %s370
          %s372 = sshll.u32 %s368, 4
          %s373 = int_to_ptr.hbm [resolvable:$true] %s372
          %375 = dma.vmem_to_hbm [thread:$0]  %s371, 128, %s373, %s358
        $region40: #{tpu_custom_call.1} parent=27 // pred_fallthru
          _
      $region28: #{tpu_custom_call.1} parent=5 // pred_fallthru
        _
      %p376 = scmp.le.s32.totalorder 2, %s15
      // Predicated region
      $region41: #{tpu_custom_call.1} parent=5 // pred_check
        %p377 = pneg %p376
      $region42: #{tpu_custom_call.1} parent=5 // pred_check_branch
        %379 = sbr.rel (%p377) target = $region44
      $region43: #{tpu_custom_call.1} parent=5 // pred_region
        %s380 = ssub.s32 %s15, 2
        // Predicated region
        $region45: #{tpu_custom_call.1} parent=43 // pred_check
          %p381 = pneg %p91
        $region46: #{tpu_custom_call.1} parent=43 // pred_check_branch
          %383 = sbr.rel (%p381) target = $region48
        $region47: #{tpu_custom_call.1} parent=43 // pred_region
          %s384 = sand.u32 %s76, 1
          %s385 = scalar_lea.sflag [#allocation4], %s384
          %s386 = sand.u32 %s76, 1
          %s387 = smul.addr %s386, 8
          %s388 = scalar_lea.vmem [#allocation7], %s387
          %390 = dma.done %s385, 128
        $region48: #{tpu_custom_call.1} parent=43 // pred_fallthru
          _
      $region44: #{tpu_custom_call.1} parent=5 // pred_fallthru
        _
    $region6: #{tpu_custom_call.1} parent=1 // loop_footer
      %s19 = sadd.s32 1, %s15
    $region7: #{tpu_custom_call.1} parent=1 // loop_footer_branch
      %14 = sbr.rel target = $region3
    $region8: #{tpu_custom_call.1} parent=1 // loop_exit
      _
    %391 = vsyncpa [#allocation3], 1
    %s392 = scalar_lea.sflag [#allocation3], 1
    %393 = vsyncpa %s392, 1
    %394 = vsyncpa [#allocation6], 1
    %s395 = scalar_lea.sflag [#allocation6], 1
    %396 = vsyncpa %s395, 1
    %397 = vsyncpa [#allocation4], 1
    %s398 = scalar_lea.sflag [#allocation4], 1
    %399 = vsyncpa %s398, 1

// kernel: tpu_custom_call.1
$region0: #{tpu_custom_call.1}
  #allocation0 [shape = 'u32[]', space=smem, size = 0x4, offset = 0x4, fixed_abs, tag = 'smem constant byte address 0x4 - core index']
  #allocation1 [shape = 'u32[72,128]{1,0:T(1,128)}', space=vmem, size = 0x9000, scoped, tag = 'internal scratch']
  %s0 = inlined_call_operand.vmem [shape: f32[8,2,32], index: 0, kind: input, shape index: {}]
  %s1 = inlined_call_operand.vmem [shape: f32[1000,1,32], index: 1, kind: input, shape index: {}]
  %s2 = inlined_call_operand.hbm [shape: f32[8,2,32], index: 2, kind: output, shape index: {}]
  %s3 = sld [smem:[#allocation0]]
  $region41: #{tpu_custom_call.1} parent=0
    _
  %s5 = ssub.s32 1, %s3
  %s6 = scalar_select 0, %s5, %s3
  $region1: #{tpu_custom_call.1} parent=0
    #allocation2 [shape = 'u8[8192]{0}', space=vmem, size = 0x2000, scoped, tag = 'output window, operand 0']
    #allocation3 [shape = 's32[2]{0}', space=sflag, size = 0x8, scoped, tag = 'scoped memory for tpu_custom_call.1']
    %7 = vsyncpa [#allocation3], 0
    %s8 = scalar_lea.sflag [#allocation3], 1
    %9 = vsyncpa %s8, 0
    loop: start=0, step=1, limit=4
    $region2: #{tpu_custom_call.1} parent=1 // loop_pre_header
      _
    $region3: #{tpu_custom_call.1} parent=1 // loop_header
      %s11 = sphi 0, %s15
      %p12 = scmp.ge.s32.totalorder %s11, 4
      %s21 = sphi 0, %s23
      %s24 = sphi 0, %s21
      %s25 = sphi 0, %s24
      %s41 = sphi 0, %s25
      %s47 = sphi 0, %s49
      %s50 = sphi 0, %s47
      %s51 = sphi 0, %s50
      %s67 = sphi 0, %s51
      %s73 = sphi 0, %s75
      %s76 = sphi 0, %s73
      %s77 = sphi 0, %s76
      %s93 = sphi 0, %s77
    $region4: #{tpu_custom_call.1} parent=1 // loop_header_branch
      %14 = sbr.rel (%p12) target = $region8
    $region5: #{tpu_custom_call.1} parent=1 // loop_body
      %s16 = ssub.s32 %s11, 1
      %s17 = ssub.s32 %s11, 2
      %s18 = sadd.s32 %s11, 1
      %s19 = ssub.s32 %s11, %s18
      %p20 = scmp.eq.s32.totalorder %s19, 0
      %s22 = sadd.s32 %s21, 1
      %s23 = scalar_select %p20, %s21, %s22
      %p26 = pneg %p20
      %p27 = scmp.eq.s32.totalorder %s11, 1
      %p28 = por %p26, %p27
      %p29 = scmp.ne.s32.totalorder %s21, %s24
      %p30 = scmp.eq.s32.totalorder %s11, 0
      %p31 = por %p29, %p30
      %p32 = scmp.ne.s32.totalorder %s21, %s24
      %p33 = scmp.eq.s32.totalorder %s16, 1
      %p34 = por %p32, %p33
      %p35 = scmp.ne.s32.totalorder %s24, %s25
      %p36 = scmp.eq.s32.totalorder %s16, 0
      %p37 = por %p35, %p36
      %p38 = scmp.ne.s32.totalorder %s24, %s25
      %p39 = scmp.eq.s32.totalorder %s17, 1
      %p40 = por %p38, %p39
      %p42 = scmp.ne.s32.totalorder %s25, %s41
      %p43 = scmp.eq.s32.totalorder %s17, 0
      %p44 = por %p42, %p43
      %s45 = ssub.s32 %s11, %s18
      %p46 = scmp.eq.s32.totalorder %s45, 0
      %s48 = sadd.s32 %s47, 1
      %s49 = scalar_select %p46, %s47, %s48
      %p52 = pneg %p46
      %p53 = scmp.eq.s32.totalorder %s11, 1
      %p54 = por %p52, %p53
      %p55 = scmp.ne.s32.totalorder %s47, %s50
      %p56 = scmp.eq.s32.totalorder %s11, 0
      %p57 = por %p55, %p56
      %p58 = scmp.ne.s32.totalorder %s47, %s50
      %p59 = scmp.eq.s32.totalorder %s16, 1
      %p60 = por %p58, %p59
      %p61 = scmp.ne.s32.totalorder %s50, %s51
      %p62 = scmp.eq.s32.totalorder %s16, 0
      %p63 = por %p61, %p62
      %p64 = scmp.ne.s32.totalorder %s50, %s51
      %p65 = scmp.eq.s32.totalorder %s17, 1
      %p66 = por %p64, %p65
      %p68 = scmp.ne.s32.totalorder %s51, %s67
      %p69 = scmp.eq.s32.totalorder %s17, 0
      %p70 = por %p68, %p69
      %s71 = ssub.s32 %s11, %s18
      %p72 = scmp.eq.s32.totalorder %s71, 0
      %s74 = sadd.s32 %s73, 1
      %s75 = scalar_select %p72, %s73, %s74
      %p78 = pneg %p72
      %p79 = scmp.eq.s32.totalorder %s11, 1
      %p80 = por %p78, %p79
      %p81 = scmp.ne.s32.totalorder %s73, %s76
      %p82 = scmp.eq.s32.totalorder %s11, 0
      %p83 = por %p81, %p82
      %p84 = scmp.ne.s32.totalorder %s73, %s76
      %p85 = scmp.eq.s32.totalorder %s16, 1
      %p86 = por %p84, %p85
      %p87 = scmp.ne.s32.totalorder %s76, %s77
      %p88 = scmp.eq.s32.totalorder %s16, 0
      %p89 = por %p87, %p88
      %p90 = scmp.ne.s32.totalorder %s76, %s77
      %p91 = scmp.eq.s32.totalorder %s17, 1
      %p92 = por %p90, %p91
      %p94 = scmp.ne.s32.totalorder %s77, %s93
      %p95 = scmp.eq.s32.totalorder %s17, 0
      %p96 = por %p94, %p95
      %p97 = scmp.le.s32.totalorder 1, %s11
      %p98 = scmp.lt.s32.totalorder %s11, 3
      %p99 = pnand %p97, %p98
      %p100 = pneg %p99
      // Predicated region
      $region9: #{tpu_custom_call.1} parent=5 // pred_check
        _
      $region10: #{tpu_custom_call.1} parent=5 // pred_check_branch
        %102 = sbr.rel (%p99) target = $region12
      $region11: #{tpu_custom_call.1} parent=5 // pred_region
        %s103 = ssub.s32 %s11, 1
      $region12: #{tpu_custom_call.1} parent=5 // pred_fallthru
        _
      %p104 = scmp.lt.s32.totalorder %s11, 2
      // Predicated region
      $region13: #{tpu_custom_call.1} parent=5 // pred_check
        %p105 = pneg %p104
      $region14: #{tpu_custom_call.1} parent=5 // pred_check_branch
        %107 = sbr.rel (%p105) target = $region16
      $region15: #{tpu_custom_call.1} parent=5 // pred_region
        // Predicated region
        $region17: #{tpu_custom_call.1} parent=15 // pred_check
          %p108 = pneg %p31
        $region18: #{tpu_custom_call.1} parent=15 // pred_check_branch
          %110 = sbr.rel (%p108) target = $region20
        $region19: #{tpu_custom_call.1} parent=15 // pred_region
          %s111 = smul.u32 4, %s11
          %p112 = scmp.lt.s32.totalorder %s111, 7
          %s113 = scalar_select %p112, %s111, 7
          %s114 = smul.addr %s113, 2
          %s115 = scalar_lea.vmem %s0, %s114
          %s116 = smul.u32 4, %s11
        $region20: #{tpu_custom_call.1} parent=15 // pred_fallthru
          _
        // Predicated region
        $region21: #{tpu_custom_call.1} parent=15 // pred_check
          %p117 = pneg %p57
        $region22: #{tpu_custom_call.1} parent=15 // pred_check_branch
          %119 = sbr.rel (%p117) target = $region24
        $region23: #{tpu_custom_call.1} parent=15 // pred_region
          %s120 = smul.u32 4, %s11
          %p121 = scmp.lt.s32.totalorder %s120, 999
          %s122 = scalar_select %p121, %s120, 999
          %s123 = scalar_lea.vmem %s1, %s122
          %s124 = smul.u32 4, %s11
        $region24: #{tpu_custom_call.1} parent=15 // pred_fallthru
          _
      $region16: #{tpu_custom_call.1} parent=5 // pred_fallthru
        _
      %p125 = scmp.le.s32.totalorder 1, %s11
      %p126 = scmp.lt.s32.totalorder %s11, 3
      %p127 = pnand %p125, %p126
      %p128 = pneg %p127
      // Predicated region
      $region25: #{tpu_custom_call.1} parent=5 // pred_check
        _
      $region26: #{tpu_custom_call.1} parent=5 // pred_check_branch
        %130 = sbr.rel (%p127) target = $region28
      $region27: #{tpu_custom_call.1} parent=5 // pred_region
        %s131 = ssub.s32 %s11, 1
        %s132 = smul.u32 4, %s16
        %p133 = scmp.lt.s32.totalorder %s132, 7
        %s134 = scalar_select %p133, %s132, 7
        %s135 = smul.addr %s134, 2
        %s136 = scalar_lea.vmem %s0, %s135
        %p137 = pneg %p37
        %p138 = pneg %p34
        %s139 = smul.u32 4, %s16
        %p140 = scmp.lt.s32.totalorder %s139, 999
        %s141 = scalar_select %p140, %s139, 999
        %s142 = scalar_lea.vmem %s1, %s141
        %p143 = pneg %p63
        %p144 = pneg %p60
        %p145 = pneg %p89
        %p146 = pneg %p86
        %s147 = sand.u32 %s76, 1
        %s148 = scalar_lea.sflag [#allocation3], %s147
        %s149 = sand.u32 %s76, 1
        %s150 = smul.addr %s149, 8
        %s151 = scalar_lea.vmem [#allocation2], %s150
        %s152 = smul.u32 4, %s16
        %p153 = scmp.lt.s32.totalorder %s152, 7
        %s154 = scalar_select %p153, %s152, 7
        %s155 = smul.addr %s154, 2
        %s156 = scalar_lea.vmem %s0, %s155
        %s157 = smul.u32 4, %s16
        %s158 = smul.u32 4, %s16
        %p159 = scmp.lt.s32.totalorder %s158, 999
        %s160 = scalar_select %p159, %s158, 999
        %s161 = scalar_lea.vmem %s1, %s160
        %s162 = smul.u32 4, %s16
        %s163 = smul.u32 4, %s16
        %v164 = vld [vmem:[%s156] sm:$0x3]
        %v165 = vld [vmem:[%s156 + $0x2] sm:$0x3]
        %v166 = vld [vmem:[%s156 + $0x4] sm:$0x3]
        %v167 = vld [vmem:[%s156 + $0x6] sm:$0x3]
        %v168 = vld [vmem:[%s161] sm:$0x1]
        %v169 = vld [vmem:[%s161 + $0x1] sm:$0x1]
        %v170 = vld [vmem:[%s161 + $0x2] sm:$0x1]
        %v171 = vld [vmem:[%s161 + $0x3] sm:$0x1]
        %v176 = vperm.slane %v168, 0
        %v177 = vperm.slane %v169, 0
        %v178 = vperm.slane %v170, 0
        %v179 = vperm.slane %v171, 0
        %v184 = vadd.f32 %v164, %v176
        %v185 = vadd.f32 %v165, %v177
        %v186 = vadd.f32 %v166, %v178
        %v187 = vadd.f32 %v167, %v179
        %vm188 = vcmask 254976
        %189 = vst.msk [vmem:[%s151] sm:$0x3] %vm188, %v184
        %190 = vst.msk [vmem:[%s151 + $0x2] sm:$0x3] %vm188, %v185
        %191 = vst.msk [vmem:[%s151 + $0x4] sm:$0x3] %vm188, %v186
        %192 = vst.msk [vmem:[%s151 + $0x6] sm:$0x3] %vm188, %v187
        %s193 = sand.u32 %s76, 1
        %s194 = scalar_lea.sflag [#allocation3], %s193
        %s195 = sand.u32 %s76, 1
        %s196 = smul.addr %s195, 8
        %s197 = scalar_lea.vmem [#allocation2], %s196
        // Predicated region
        $region29: #{tpu_custom_call.1} parent=27 // pred_check
          %p198 = pneg %p86
        $region30: #{tpu_custom_call.1} parent=27 // pred_check_branch
          %200 = sbr.rel (%p198) target = $region32
        $region31: #{tpu_custom_call.1} parent=27 // pred_region
          %s201 = smul.u32 4, %s16
          %203 = vsyncadd %s194, 0
          %s204 = smul.addr %s201, 2
          %s205 = scalar_lea.hbm %s2, %s204
          %s206 = sshll.u32 %s197, 4
          %s207 = int_to_ptr.vmem [resolvable:$true] %s206
          %s208 = sshll.u32 %s205, 4
          %s209 = int_to_ptr.hbm [resolvable:$true] %s208
          %214 = dma.vmem_to_hbm [thread:$0]  %s207, 128, %s209, %s194, 32, 32, 2
        $region32: #{tpu_custom_call.1} parent=27 // pred_fallthru
          _
      $region28: #{tpu_custom_call.1} parent=5 // pred_fallthru
        _
      %p215 = scmp.le.s32.totalorder 2, %s11
      // Predicated region
      $region33: #{tpu_custom_call.1} parent=5 // pred_check
        %p216 = pneg %p215
      $region34: #{tpu_custom_call.1} parent=5 // pred_check_branch
        %218 = sbr.rel (%p216) target = $region36
      $region35: #{tpu_custom_call.1} parent=5 // pred_region
        %s219 = ssub.s32 %s11, 2
        // Predicated region
        $region37: #{tpu_custom_call.1} parent=35 // pred_check
          %p220 = pneg %p92
        $region38: #{tpu_custom_call.1} parent=35 // pred_check_branch
          %222 = sbr.rel (%p220) target = $region40
        $region39: #{tpu_custom_call.1} parent=35 // pred_region
          %s223 = sand.u32 %s77, 1
          %s224 = scalar_lea.sflag [#allocation3], %s223
          %s225 = sand.u32 %s77, 1
          %s226 = smul.addr %s225, 8
          %s227 = scalar_lea.vmem [#allocation2], %s226
          %229 = dma.done %s224, 128
        $region40: #{tpu_custom_call.1} parent=35 // pred_fallthru
          _
      $region36: #{tpu_custom_call.1} parent=5 // pred_fallthru
        _
    $region6: #{tpu_custom_call.1} parent=1 // loop_footer
      %s15 = sadd.s32 1, %s11
    $region7: #{tpu_custom_call.1} parent=1 // loop_footer_branch
      %10 = sbr.rel target = $region3
    $region8: #{tpu_custom_call.1} parent=1 // loop_exit
      _
    %230 = vsyncpa [#allocation3], 1
    %s231 = scalar_lea.sflag [#allocation3], 1
    %232 = vsyncpa %s231, 1

</llo_original>
